<compile_context>
chip_gen: v5e
topology: v5e:2x2
jax: 0.10.0
libtpu: 0.0.40
codegen_flags: <defaults>
</compile_context>

<pallas_src>
import jax
import jax.numpy as jnp
from jax.experimental import pallas as pl
from jax.experimental.pallas import tpu as pltpu


# -----------------------------------------------------------------------------
# Wrapper-side parameter folding (tiny tensors, fused by XLA around the kernel)
# -----------------------------------------------------------------------------
def fold_bn(gamma, beta, mean, var, eps=1e-5):
    scale = gamma / jnp.sqrt(var + eps)
    bias = beta - mean * scale
    return scale, bias


def _fold_bn_into_conv(w_hwio, bn):
    """Fold BN scale into the conv weight (per Cout); returns f32 weight + f32 bias."""
    scale, bias = fold_bn(*bn)
    return w_hwio * scale[None, None, None, :], bias


def _banded_weight(w_hwio, W, dilation):
    """Banded ('Toeplitz along W') matmul form of a KxK stride-1 'same' conv.

    Returns (K, W*Cin, W*Cout) f32 such that, with the activation stored as a
    row-padded (rows, W*Cin) slab,
        out[h, :] = sum_kh  act_rows[h + kh*dilation, :] @ mat[kh]
    Out-of-range W taps are zero entries, so the kernel never shifts along W.
    """
    K, _, Cin, Cout = w_hwio.shape
    half = K // 2
    mats = []
    for kh in range(K):
        m = jnp.zeros((W * Cin, W * Cout), jnp.float32)
        for kw in range(K):
            off = (kw - half) * dilation
            # shift[c, w] = 1  iff  c == w + off   (off-band identity)
            shift = jnp.eye(W, k=-off, dtype=jnp.float32)
            m = m + jnp.kron(shift, w_hwio[kh, kw])
        mats.append(m)
    return jnp.stack(mats)


# -----------------------------------------------------------------------------
# Fused BlockConv kernel
# -----------------------------------------------------------------------------
def _make_block_kernel(K, H, W, Cin, Cout, dilation, pad):
    Hp = H + 2 * pad

    def kernel(x_ref, wd_ref, bd_ref, w1_ref, b1_ref, w2_ref, b2_ref,
               w3_ref, b3_ref, o_ref, xp_ref, hp_ref):
        # Zero-init the row-padded scratches (border rows must read as 0).
        xp_ref[...] = jnp.zeros(xp_ref.shape, xp_ref.dtype)
        hp_ref[...] = jnp.zeros(hp_ref.shape, hp_ref.dtype)

        x = x_ref[0]                                  # (H, W*Cin) f32
        xp_ref[pl.ds(pad, H), :] = x                  # place data inside the halo

        # Downsample branch: 1x1 conv + folded BN (no activation).
        identity = jnp.dot(x.astype(jnp.bfloat16), wd_ref[...],
                           preferred_element_type=jnp.float32) + bd_ref[...]

        def conv_bn_relu(src_ref, wm_ref, b_ref):
            # K MXU matmuls, one per kh row offset; tap 0 initialises the acc.
            acc = jnp.dot(src_ref[pl.ds(0, H), :].astype(jnp.bfloat16),
                          wm_ref[0], preferred_element_type=jnp.float32)
            for kh in range(1, K):
                acc = acc + jnp.dot(
                    src_ref[pl.ds(kh * dilation, H), :].astype(jnp.bfloat16),
                    wm_ref[kh], preferred_element_type=jnp.float32)
            return jnp.maximum(acc + b_ref[...], 0.0)     # (H, W*Cout) f32

        h = conv_bn_relu(xp_ref, w1_ref, b1_ref)
        hp_ref[pl.ds(pad, H), :] = h
        h = conv_bn_relu(hp_ref, w2_ref, b2_ref)
        hp_ref[pl.ds(pad, H), :] = h
        h = conv_bn_relu(hp_ref, w3_ref, b3_ref)

        # Dropout(0.1) is identity in eval mode; residual add, lane-dense store.
        o_ref[0] = (h + identity).astype(o_ref.dtype)

    return kernel


def block_conv_forward(x_nchw, params, dilation=1):
    """BlockConv forward. Input/output are NCHW like the PyTorch module."""
    N, Cin, H, W = x_nchw.shape
    K = params["w1"].shape[0]
    Cout = params["w1"].shape[-1]
    assert K % 2 == 1, "only odd kernel_size ('same' padding) supported"
    pad = dilation * (K // 2)
    Hp = H + 2 * pad

    # NCHW -> lane-dense (N, H, W*Cin) slabs (channels folded into the lane axis).
    x2d = jnp.transpose(x_nchw, (0, 2, 3, 1)).reshape(N, H, W * Cin)

    # Fold BN into weights; build banded bf16 matmul weights + tiled f32 biases.
    def stage_weights(name_w, name_bn):
        wf, b = _fold_bn_into_conv(params[name_w], params[name_bn])
        wm = _banded_weight(wf, W, dilation).astype(jnp.bfloat16)
        bt = jnp.tile(b, W).reshape(1, W * Cout).astype(jnp.float32)
        return wm, bt

    wd_f, bd = _fold_bn_into_conv(params["ds_w"], params["ds_bn"])
    wd_mat = jnp.kron(jnp.eye(W, dtype=jnp.float32), wd_f[0, 0]).astype(jnp.bfloat16)
    bd_t = jnp.tile(bd, W).reshape(1, W * Cout).astype(jnp.float32)
    w1_mat, b1_t = stage_weights("w1", "bn1")
    w2_mat, b2_t = stage_weights("w2", "bn2")
    w3_mat, b3_t = stage_weights("w3", "bn3")

    kernel = _make_block_kernel(K, H, W, Cin, Cout, dilation, pad)

    const2 = lambda n: (0, 0)
    const3 = lambda n: (0, 0, 0)
    in_specs = [
        pl.BlockSpec((1, H, W * Cin), lambda n: (n, 0, 0)),        # x
        pl.BlockSpec((W * Cin, W * Cout), const2),                 # downsample weight
        pl.BlockSpec((1, W * Cout), const2),                       # downsample bias
        pl.BlockSpec((K, W * Cin, W * Cout), const3),              # stage-1 weight
        pl.BlockSpec((1, W * Cout), const2),
        pl.BlockSpec((K, W * Cout, W * Cout), const3),             # stage-2 weight
        pl.BlockSpec((1, W * Cout), const2),
        pl.BlockSpec((K, W * Cout, W * Cout), const3),             # stage-3 weight
        pl.BlockSpec((1, W * Cout), const2),
    ]

    # Advisory cost estimate for XLA scheduling around the custom call.
    flops = 2 * N * H * (W * Cin) * (W * Cout)                 # 1x1 downsample
    flops += 2 * N * K * H * (W * Cin) * (W * Cout)            # stage 1
    flops += 2 * 2 * N * K * H * (W * Cout) * (W * Cout)       # stages 2 & 3
    weight_bytes = 2 * (W * Cin * W * Cout + K * W * Cin * W * Cout
                        + 2 * K * W * Cout * W * Cout) + 4 * 4 * W * Cout
    bytes_accessed = 4 * N * H * W * Cin + weight_bytes + 4 * N * H * W * Cout

    out2d = pl.pallas_call(
        kernel,
        out_shape=jax.ShapeDtypeStruct((N, H, W * Cout), jnp.float32),
        grid_spec=pltpu.PrefetchScalarGridSpec(
            num_scalar_prefetch=0,
            grid=(N,),
            in_specs=in_specs,
            out_specs=pl.BlockSpec((1, H, W * Cout), lambda n: (n, 0, 0)),
            scratch_shapes=[pltpu.VMEM((Hp, W * Cin), jnp.float32),   # padded x
                            pltpu.VMEM((Hp, W * Cout), jnp.float32)], # padded h
        ),
        compiler_params=pltpu.CompilerParams(
            dimension_semantics=("parallel",)),
        cost_estimate=pl.CostEstimate(flops=flops, transcendentals=0,
                                      bytes_accessed=bytes_accessed),
    )(x2d, wd_mat, bd_t, w1_mat, b1_t, w2_mat, b2_t, w3_mat, b3_t)

    # (N, H, W*Cout) -> (N, H, W, Cout) is a pure bitcast; then back to NCHW.
    return jnp.transpose(out2d.reshape(N, H, W, Cout), (0, 3, 1, 2))


# -----------------------------------------------------------------------------
# Pure-JAX reference (mirrors the kernel's bf16-operand / f32-accumulate math)
# -----------------------------------------------------------------------------
def block_conv_reference(x_nchw, params, dilation=1):
    x = jnp.transpose(x_nchw, (0, 2, 3, 1))

    def conv(xf, w_bf16, dil):
        K = w_bf16.shape[0]
        pad = dil * (K // 2)
        return jax.lax.conv_general_dilated(
            xf.astype(jnp.bfloat16), w_bf16, (1, 1),
            ((pad, pad), (pad, pad)), rhs_dilation=(dil, dil),
            dimension_numbers=("NHWC", "HWIO", "NHWC"),
            preferred_element_type=jnp.float32)

    def stage(name_w, name_bn):
        wf, b = _fold_bn_into_conv(params[name_w], params[name_bn])
        return wf.astype(jnp.bfloat16), b

    wd, bd = stage("ds_w", "ds_bn")
    identity = conv(x, wd, 1) + bd
    w1, b1 = stage("w1", "bn1")
    h = jnp.maximum(conv(x, w1, dilation) + b1, 0.0)
    w2, b2 = stage("w2", "bn2")
    h = jnp.maximum(conv(h, w2, dilation) + b2, 0.0)
    w3, b3 = stage("w3", "bn3")
    h = jnp.maximum(conv(h, w3, dilation) + b3, 0.0)
    return jnp.transpose(h + identity, (0, 3, 1, 2))


# -----------------------------------------------------------------------------
# Deterministic parameter init
# -----------------------------------------------------------------------------
def init_params(key, n_input, n_output, kernel_size=3):
    ks = jax.random.split(key, 8)

    def bn_params(k, c):
        k1, k2, k3, k4 = jax.random.split(k, 4)
        gamma = 1.0 + 0.1 * jax.random.normal(k1, (c,), jnp.float32)
        beta = 0.1 * jax.random.normal(k2, (c,), jnp.float32)
        mean = 0.1 * jax.random.normal(k3, (c,), jnp.float32)
        var = jnp.abs(jax.random.normal(k4, (c,), jnp.float32)) + 0.5
        return gamma, beta, mean, var

    def conv_w(k, kh, kw, cin, cout):
        fan_in = kh * kw * cin
        return jax.random.normal(k, (kh, kw, cin, cout), jnp.float32) \
            * (2.0 / fan_in) ** 0.5

    K = kernel_size
    return {
        "ds_w": conv_w(ks[0], 1, 1, n_input, n_output),
        "ds_bn": bn_params(ks[1], n_output),
        "w1": conv_w(ks[2], K, K, n_input, n_output),
        "bn1": bn_params(ks[3], n_output),
        "w2": conv_w(ks[4], K, K, n_output, n_output),
        "bn2": bn_params(ks[5], n_output),
        "w3": conv_w(ks[6], K, K, n_output, n_output),
        "bn3": bn_params(ks[7], n_output),
    }


if __name__ == "__main__":
    key = jax.random.PRNGKey(0)
    k_x, k_p = jax.random.split(key)

    N, Cin, Cout, H, W = 2, 4, 8, 16, 16
    x = jax.random.normal(k_x, (N, Cin, H, W), jnp.float32)   # NCHW like PyTorch
    params = init_params(k_p, Cin, Cout, kernel_size=3)

    fwd = jax.jit(block_conv_forward, static_argnames=("dilation",))
    out = jax.block_until_ready(fwd(x, params, dilation=1))
    ref = jax.block_until_ready(block_conv_reference(x, params, dilation=1))

    assert out.shape == (N, Cout, H, W), out.shape
    max_err = float(jnp.max(jnp.abs(out - ref)))
    assert jnp.allclose(out, ref, atol=2e-3, rtol=2e-3), max_err
    print("KERNEL_OK")
</pallas_src>

<mosaic_0001>
module attributes {stable_mosaic.version = 11 : i64} {
  func.func @kernel(%arg0: i32, %arg1: memref<1x16x64xf32, #tpu.memory_space<vmem>>, %arg2: memref<64x128xbf16, #tpu.memory_space<vmem>>, %arg3: memref<1x128xf32, #tpu.memory_space<vmem>>, %arg4: memref<3x64x128xbf16, #tpu.memory_space<vmem>>, %arg5: memref<1x128xf32, #tpu.memory_space<vmem>>, %arg6: memref<3x128x128xbf16, #tpu.memory_space<vmem>>, %arg7: memref<1x128xf32, #tpu.memory_space<vmem>>, %arg8: memref<3x128x128xbf16, #tpu.memory_space<vmem>>, %arg9: memref<1x128xf32, #tpu.memory_space<vmem>>, %arg10: memref<1x16x128xf32, #tpu.memory_space<vmem>>, %arg11: memref<18x64xf32, #tpu.memory_space<vmem>>, %arg12: memref<18x128xf32, #tpu.memory_space<vmem>>) attributes {dimension_semantics = [#tpu.dimension_semantics<parallel>], iteration_bounds = array<i64: 2>, scalar_prefetch = 0 : i64, scratch_operands = 2 : i64, tpu.core_type = #tpu.core_type<tc>, window_params = [{transform_indices = @transform_0, window_bounds = array<i64: 1, 16, 64>}, {pipeline_mode = #tpu.pipeline_mode<synchronous>, transform_indices = @transform_1, window_bounds = array<i64: 64, 128>}, {pipeline_mode = #tpu.pipeline_mode<synchronous>, transform_indices = @transform_2, window_bounds = array<i64: 1, 128>}, {pipeline_mode = #tpu.pipeline_mode<synchronous>, transform_indices = @transform_3, window_bounds = array<i64: 3, 64, 128>}, {pipeline_mode = #tpu.pipeline_mode<synchronous>, transform_indices = @transform_4, window_bounds = array<i64: 1, 128>}, {pipeline_mode = #tpu.pipeline_mode<synchronous>, transform_indices = @transform_5, window_bounds = array<i64: 3, 128, 128>}, {pipeline_mode = #tpu.pipeline_mode<synchronous>, transform_indices = @transform_6, window_bounds = array<i64: 1, 128>}, {pipeline_mode = #tpu.pipeline_mode<synchronous>, transform_indices = @transform_7, window_bounds = array<i64: 3, 128, 128>}, {pipeline_mode = #tpu.pipeline_mode<synchronous>, transform_indices = @transform_8, window_bounds = array<i64: 1, 128>}, {transform_indices = @transform_9, window_bounds = array<i64: 1, 16, 128>}]} {
    %cst = arith.constant 0.000000e+00 : f32
    %0 = vector.broadcast %cst : f32 to vector<18x64xf32>
    %c0 = arith.constant 0 : index
    %c0_0 = arith.constant 0 : index
    %1 = vector.load %arg11[%c0, %c0_0] : memref<18x64xf32, #tpu.memory_space<vmem>>, vector<18x64xf32>
    tpu.vector_store %arg11[%c0, %c0_0], %0 {strides = array<i32>} : memref<18x64xf32, #tpu.memory_space<vmem>>, vector<18x64xf32>,
    %cst_1 = arith.constant 0.000000e+00 : f32
    %2 = vector.broadcast %cst_1 : f32 to vector<18x128xf32>
    %c0_2 = arith.constant 0 : index
    %c0_3 = arith.constant 0 : index
    %3 = vector.load %arg12[%c0_2, %c0_3] : memref<18x128xf32, #tpu.memory_space<vmem>>, vector<18x128xf32>
    tpu.vector_store %arg12[%c0_2, %c0_3], %2 {strides = array<i32>} : memref<18x128xf32, #tpu.memory_space<vmem>>, vector<18x128xf32>,
    %c0_4 = arith.constant 0 : index
    %c0_5 = arith.constant 0 : index
    %c0_6 = arith.constant 0 : index
    %4 = vector.load %arg1[%c0_4, %c0_5, %c0_6] : memref<1x16x64xf32, #tpu.memory_space<vmem>>, vector<1x16x64xf32>
    %5 = vector.shape_cast %4 : vector<1x16x64xf32> to vector<16x64xf32>
    %c1 = arith.constant 1 : index
    %c0_7 = arith.constant 0 : index
    %6 = vector.load %arg11[%c1, %c0_7] : memref<18x64xf32, #tpu.memory_space<vmem>>, vector<16x64xf32>
    tpu.vector_store %arg11[%c1, %c0_7], %5 {strides = array<i32>} : memref<18x64xf32, #tpu.memory_space<vmem>>, vector<16x64xf32>,
    %7 = arith.truncf %5 : vector<16x64xf32> to vector<16x64xbf16>
    %c0_8 = arith.constant 0 : index
    %c0_9 = arith.constant 0 : index
    %8 = vector.load %arg2[%c0_8, %c0_9] : memref<64x128xbf16, #tpu.memory_space<vmem>>, vector<64x128xbf16>
    %cst_10 = arith.constant dense<0.000000e+00> : vector<16x128xf32>
    %9 = tpu.matmul %7, %8, %cst_10 {dimension_numbers = #tpu.dot_dimension_numbers<[1], [0], [0], [1], [0, 0, 1, 1], [], []>} : vector<16x64xbf16>, vector<64x128xbf16>, vector<16x128xf32> -> vector<16x128xf32>
    %c0_11 = arith.constant 0 : index
    %c0_12 = arith.constant 0 : index
    %10 = vector.load %arg3[%c0_11, %c0_12] : memref<1x128xf32, #tpu.memory_space<vmem>>, vector<1x128xf32>
    %11 = vector.broadcast %10 : vector<1x128xf32> to vector<16x128xf32>
    %12 = arith.addf %9, %11 : vector<16x128xf32>
    %c0_13 = arith.constant 0 : index
    %c0_14 = arith.constant 0 : index
    %13 = vector.load %arg11[%c0_13, %c0_14] : memref<18x64xf32, #tpu.memory_space<vmem>>, vector<16x64xf32>
    %14 = arith.truncf %13 : vector<16x64xf32> to vector<16x64xbf16>
    %c0_15 = arith.constant 0 : index
    %c0_16 = arith.constant 0 : index
    %c0_17 = arith.constant 0 : index
    %15 = vector.load %arg4[%c0_15, %c0_16, %c0_17] : memref<3x64x128xbf16, #tpu.memory_space<vmem>>, vector<1x64x128xbf16>
    %16 = vector.shape_cast %15 : vector<1x64x128xbf16> to vector<64x128xbf16>
    %cst_18 = arith.constant dense<0.000000e+00> : vector<16x128xf32>
    %17 = tpu.matmul %14, %16, %cst_18 {dimension_numbers = #tpu.dot_dimension_numbers<[1], [0], [0], [1], [0, 0, 1, 1], [], []>} : vector<16x64xbf16>, vector<64x128xbf16>, vector<16x128xf32> -> vector<16x128xf32>
    %c1_19 = arith.constant 1 : index
    %c0_20 = arith.constant 0 : index
    %18 = vector.load %arg11[%c1_19, %c0_20] : memref<18x64xf32, #tpu.memory_space<vmem>>, vector<16x64xf32>
    %19 = arith.truncf %18 : vector<16x64xf32> to vector<16x64xbf16>
    %c1_21 = arith.constant 1 : index
    %c0_22 = arith.constant 0 : index
    %c0_23 = arith.constant 0 : index
    %20 = vector.load %arg4[%c1_21, %c0_22, %c0_23] : memref<3x64x128xbf16, #tpu.memory_space<vmem>>, vector<1x64x128xbf16>
    %21 = vector.shape_cast %20 : vector<1x64x128xbf16> to vector<64x128xbf16>
    %cst_24 = arith.constant dense<0.000000e+00> : vector<16x128xf32>
    %22 = tpu.matmul %19, %21, %cst_24 {dimension_numbers = #tpu.dot_dimension_numbers<[1], [0], [0], [1], [0, 0, 1, 1], [], []>} : vector<16x64xbf16>, vector<64x128xbf16>, vector<16x128xf32> -> vector<16x128xf32>
    %23 = arith.addf %17, %22 : vector<16x128xf32>
    %c2 = arith.constant 2 : index
    %c0_25 = arith.constant 0 : index
    %24 = vector.load %arg11[%c2, %c0_25] : memref<18x64xf32, #tpu.memory_space<vmem>>, vector<16x64xf32>
    %25 = arith.truncf %24 : vector<16x64xf32> to vector<16x64xbf16>
    %c2_26 = arith.constant 2 : index
    %c0_27 = arith.constant 0 : index
    %c0_28 = arith.constant 0 : index
    %26 = vector.load %arg4[%c2_26, %c0_27, %c0_28] : memref<3x64x128xbf16, #tpu.memory_space<vmem>>, vector<1x64x128xbf16>
    %27 = vector.shape_cast %26 : vector<1x64x128xbf16> to vector<64x128xbf16>
    %cst_29 = arith.constant dense<0.000000e+00> : vector<16x128xf32>
    %28 = tpu.matmul %25, %27, %cst_29 {dimension_numbers = #tpu.dot_dimension_numbers<[1], [0], [0], [1], [0, 0, 1, 1], [], []>} : vector<16x64xbf16>, vector<64x128xbf16>, vector<16x128xf32> -> vector<16x128xf32>
    %29 = arith.addf %23, %28 : vector<16x128xf32>
    %c0_30 = arith.constant 0 : index
    %c0_31 = arith.constant 0 : index
    %30 = vector.load %arg5[%c0_30, %c0_31] : memref<1x128xf32, #tpu.memory_space<vmem>>, vector<1x128xf32>
    %31 = vector.broadcast %30 : vector<1x128xf32> to vector<16x128xf32>
    %32 = arith.addf %29, %31 : vector<16x128xf32>
    %cst_32 = arith.constant 0.000000e+00 : f32
    %33 = vector.broadcast %cst_32 : f32 to vector<16x128xf32>
    %34 = arith.maximumf %32, %33 : vector<16x128xf32>
    %c1_33 = arith.constant 1 : index
    %c0_34 = arith.constant 0 : index
    %35 = vector.load %arg12[%c1_33, %c0_34] : memref<18x128xf32, #tpu.memory_space<vmem>>, vector<16x128xf32>
    tpu.vector_store %arg12[%c1_33, %c0_34], %34 {strides = array<i32>} : memref<18x128xf32, #tpu.memory_space<vmem>>, vector<16x128xf32>,
    %c0_35 = arith.constant 0 : index
    %c0_36 = arith.constant 0 : index
    %36 = vector.load %arg12[%c0_35, %c0_36] : memref<18x128xf32, #tpu.memory_space<vmem>>, vector<16x128xf32>
    %37 = arith.truncf %36 : vector<16x128xf32> to vector<16x128xbf16>
    %c0_37 = arith.constant 0 : index
    %c0_38 = arith.constant 0 : index
    %c0_39 = arith.constant 0 : index
    %38 = vector.load %arg6[%c0_37, %c0_38, %c0_39] : memref<3x128x128xbf16, #tpu.memory_space<vmem>>, vector<1x128x128xbf16>
    %39 = vector.shape_cast %38 : vector<1x128x128xbf16> to vector<128x128xbf16>
    %cst_40 = arith.constant dense<0.000000e+00> : vector<16x128xf32>
    %40 = tpu.matmul %37, %39, %cst_40 {dimension_numbers = #tpu.dot_dimension_numbers<[1], [0], [0], [1], [0, 0, 1, 1], [], []>} : vector<16x128xbf16>, vector<128x128xbf16>, vector<16x128xf32> -> vector<16x128xf32>
    %c1_41 = arith.constant 1 : index
    %c0_42 = arith.constant 0 : index
    %41 = vector.load %arg12[%c1_41, %c0_42] : memref<18x128xf32, #tpu.memory_space<vmem>>, vector<16x128xf32>
    %42 = arith.truncf %41 : vector<16x128xf32> to vector<16x128xbf16>
    %c1_43 = arith.constant 1 : index
    %c0_44 = arith.constant 0 : index
    %c0_45 = arith.constant 0 : index
    %43 = vector.load %arg6[%c1_43, %c0_44, %c0_45] : memref<3x128x128xbf16, #tpu.memory_space<vmem>>, vector<1x128x128xbf16>
    %44 = vector.shape_cast %43 : vector<1x128x128xbf16> to vector<128x128xbf16>
    %cst_46 = arith.constant dense<0.000000e+00> : vector<16x128xf32>
    %45 = tpu.matmul %42, %44, %cst_46 {dimension_numbers = #tpu.dot_dimension_numbers<[1], [0], [0], [1], [0, 0, 1, 1], [], []>} : vector<16x128xbf16>, vector<128x128xbf16>, vector<16x128xf32> -> vector<16x128xf32>
    %46 = arith.addf %40, %45 : vector<16x128xf32>
    %c2_47 = arith.constant 2 : index
    %c0_48 = arith.constant 0 : index
    %47 = vector.load %arg12[%c2_47, %c0_48] : memref<18x128xf32, #tpu.memory_space<vmem>>, vector<16x128xf32>
    %48 = arith.truncf %47 : vector<16x128xf32> to vector<16x128xbf16>
    %c2_49 = arith.constant 2 : index
    %c0_50 = arith.constant 0 : index
    %c0_51 = arith.constant 0 : index
    %49 = vector.load %arg6[%c2_49, %c0_50, %c0_51] : memref<3x128x128xbf16, #tpu.memory_space<vmem>>, vector<1x128x128xbf16>
    %50 = vector.shape_cast %49 : vector<1x128x128xbf16> to vector<128x128xbf16>
    %cst_52 = arith.constant dense<0.000000e+00> : vector<16x128xf32>
    %51 = tpu.matmul %48, %50, %cst_52 {dimension_numbers = #tpu.dot_dimension_numbers<[1], [0], [0], [1], [0, 0, 1, 1], [], []>} : vector<16x128xbf16>, vector<128x128xbf16>, vector<16x128xf32> -> vector<16x128xf32>
    %52 = arith.addf %46, %51 : vector<16x128xf32>
    %c0_53 = arith.constant 0 : index
    %c0_54 = arith.constant 0 : index
    %53 = vector.load %arg7[%c0_53, %c0_54] : memref<1x128xf32, #tpu.memory_space<vmem>>, vector<1x128xf32>
    %54 = vector.broadcast %53 : vector<1x128xf32> to vector<16x128xf32>
    %55 = arith.addf %52, %54 : vector<16x128xf32>
    %cst_55 = arith.constant 0.000000e+00 : f32
    %56 = vector.broadcast %cst_55 : f32 to vector<16x128xf32>
    %57 = arith.maximumf %55, %56 : vector<16x128xf32>
    %c1_56 = arith.constant 1 : index
    %c0_57 = arith.constant 0 : index
    %58 = vector.load %arg12[%c1_56, %c0_57] : memref<18x128xf32, #tpu.memory_space<vmem>>, vector<16x128xf32>
    tpu.vector_store %arg12[%c1_56, %c0_57], %57 {strides = array<i32>} : memref<18x128xf32, #tpu.memory_space<vmem>>, vector<16x128xf32>,
    %c0_58 = arith.constant 0 : index
    %c0_59 = arith.constant 0 : index
    %59 = vector.load %arg12[%c0_58, %c0_59] : memref<18x128xf32, #tpu.memory_space<vmem>>, vector<16x128xf32>
    %60 = arith.truncf %59 : vector<16x128xf32> to vector<16x128xbf16>
    %c0_60 = arith.constant 0 : index
    %c0_61 = arith.constant 0 : index
    %c0_62 = arith.constant 0 : index
    %61 = vector.load %arg8[%c0_60, %c0_61, %c0_62] : memref<3x128x128xbf16, #tpu.memory_space<vmem>>, vector<1x128x128xbf16>
    %62 = vector.shape_cast %61 : vector<1x128x128xbf16> to vector<128x128xbf16>
    %cst_63 = arith.constant dense<0.000000e+00> : vector<16x128xf32>
    %63 = tpu.matmul %60, %62, %cst_63 {dimension_numbers = #tpu.dot_dimension_numbers<[1], [0], [0], [1], [0, 0, 1, 1], [], []>} : vector<16x128xbf16>, vector<128x128xbf16>, vector<16x128xf32> -> vector<16x128xf32>
    %c1_64 = arith.constant 1 : index
    %c0_65 = arith.constant 0 : index
    %64 = vector.load %arg12[%c1_64, %c0_65] : memref<18x128xf32, #tpu.memory_space<vmem>>, vector<16x128xf32>
    %65 = arith.truncf %64 : vector<16x128xf32> to vector<16x128xbf16>
    %c1_66 = arith.constant 1 : index
    %c0_67 = arith.constant 0 : index
    %c0_68 = arith.constant 0 : index
    %66 = vector.load %arg8[%c1_66, %c0_67, %c0_68] : memref<3x128x128xbf16, #tpu.memory_space<vmem>>, vector<1x128x128xbf16>
    %67 = vector.shape_cast %66 : vector<1x128x128xbf16> to vector<128x128xbf16>
    %cst_69 = arith.constant dense<0.000000e+00> : vector<16x128xf32>
    %68 = tpu.matmul %65, %67, %cst_69 {dimension_numbers = #tpu.dot_dimension_numbers<[1], [0], [0], [1], [0, 0, 1, 1], [], []>} : vector<16x128xbf16>, vector<128x128xbf16>, vector<16x128xf32> -> vector<16x128xf32>
    %69 = arith.addf %63, %68 : vector<16x128xf32>
    %c2_70 = arith.constant 2 : index
    %c0_71 = arith.constant 0 : index
    %70 = vector.load %arg12[%c2_70, %c0_71] : memref<18x128xf32, #tpu.memory_space<vmem>>, vector<16x128xf32>
    %71 = arith.truncf %70 : vector<16x128xf32> to vector<16x128xbf16>
    %c2_72 = arith.constant 2 : index
    %c0_73 = arith.constant 0 : index
    %c0_74 = arith.constant 0 : index
    %72 = vector.load %arg8[%c2_72, %c0_73, %c0_74] : memref<3x128x128xbf16, #tpu.memory_space<vmem>>, vector<1x128x128xbf16>
    %73 = vector.shape_cast %72 : vector<1x128x128xbf16> to vector<128x128xbf16>
    %cst_75 = arith.constant dense<0.000000e+00> : vector<16x128xf32>
    %74 = tpu.matmul %71, %73, %cst_75 {dimension_numbers = #tpu.dot_dimension_numbers<[1], [0], [0], [1], [0, 0, 1, 1], [], []>} : vector<16x128xbf16>, vector<128x128xbf16>, vector<16x128xf32> -> vector<16x128xf32>
    %75 = arith.addf %69, %74 : vector<16x128xf32>
    %c0_76 = arith.constant 0 : index
    %c0_77 = arith.constant 0 : index
    %76 = vector.load %arg9[%c0_76, %c0_77] : memref<1x128xf32, #tpu.memory_space<vmem>>, vector<1x128xf32>
    %77 = vector.broadcast %76 : vector<1x128xf32> to vector<16x128xf32>
    %78 = arith.addf %75, %77 : vector<16x128xf32>
    %cst_78 = arith.constant 0.000000e+00 : f32
    %79 = vector.broadcast %cst_78 : f32 to vector<16x128xf32>
    %80 = arith.maximumf %78, %79 : vector<16x128xf32>
    %81 = arith.addf %80, %12 : vector<16x128xf32>
    %c0_79 = arith.constant 0 : index
    %c0_80 = arith.constant 0 : index
    %c0_81 = arith.constant 0 : index
    %82 = vector.load %arg10[%c0_79, %c0_80, %c0_81] : memref<1x16x128xf32, #tpu.memory_space<vmem>>, vector<1x16x128xf32>
    %83 = vector.shape_cast %82 : vector<1x16x128xf32> to vector<16x128xf32>
    %84 = vector.shape_cast %81 : vector<16x128xf32> to vector<1x16x128xf32>
    tpu.vector_store %arg10[%c0_79, %c0_80, %c0_81], %84 {strides = array<i32>} : memref<1x16x128xf32, #tpu.memory_space<vmem>>, vector<1x16x128xf32>,
    return
  }
  func.func @transform_0(%arg0: i32) -> (i32, i32, i32) {
    %c0_i32 = arith.constant 0 : i32
    %c0_i32_0 = arith.constant 0 : i32
    %c0_i32_1 = arith.constant 0 : i32
    return %arg0, %c0_i32, %c0_i32_0 : i32, i32, i32
  }
  func.func @transform_1(%arg0: i32) -> (i32, i32) {
    %c0_i32 = arith.constant 0 : i32
    %c0_i32_0 = arith.constant 0 : i32
    %c0_i32_1 = arith.constant 0 : i32
    return %c0_i32, %c0_i32_0 : i32, i32
  }
  func.func @transform_2(%arg0: i32) -> (i32, i32) {
    %c0_i32 = arith.constant 0 : i32
    %c0_i32_0 = arith.constant 0 : i32
    %c0_i32_1 = arith.constant 0 : i32
    return %c0_i32, %c0_i32_0 : i32, i32
  }
  func.func @transform_3(%arg0: i32) -> (i32, i32, i32) {
    %c0_i32 = arith.constant 0 : i32
    %c0_i32_0 = arith.constant 0 : i32
    %c0_i32_1 = arith.constant 0 : i32
    %c0_i32_2 = arith.constant 0 : i32
    return %c0_i32, %c0_i32_0, %c0_i32_1 : i32, i32, i32
  }
  func.func @transform_4(%arg0: i32) -> (i32, i32) {
    %c0_i32 = arith.constant 0 : i32
    %c0_i32_0 = arith.constant 0 : i32
    %c0_i32_1 = arith.constant 0 : i32
    return %c0_i32, %c0_i32_0 : i32, i32
  }
  func.func @transform_5(%arg0: i32) -> (i32, i32, i32) {
    %c0_i32 = arith.constant 0 : i32
    %c0_i32_0 = arith.constant 0 : i32
    %c0_i32_1 = arith.constant 0 : i32
    %c0_i32_2 = arith.constant 0 : i32
    return %c0_i32, %c0_i32_0, %c0_i32_1 : i32, i32, i32
  }
  func.func @transform_6(%arg0: i32) -> (i32, i32) {
    %c0_i32 = arith.constant 0 : i32
    %c0_i32_0 = arith.constant 0 : i32
    %c0_i32_1 = arith.constant 0 : i32
    return %c0_i32, %c0_i32_0 : i32, i32
  }
  func.func @transform_7(%arg0: i32) -> (i32, i32, i32) {
    %c0_i32 = arith.constant 0 : i32
    %c0_i32_0 = arith.constant 0 : i32
    %c0_i32_1 = arith.constant 0 : i32
    %c0_i32_2 = arith.constant 0 : i32
    return %c0_i32, %c0_i32_0, %c0_i32_1 : i32, i32, i32
  }
  func.func @transform_8(%arg0: i32) -> (i32, i32) {
    %c0_i32 = arith.constant 0 : i32
    %c0_i32_0 = arith.constant 0 : i32
    %c0_i32_1 = arith.constant 0 : i32
    return %c0_i32, %c0_i32_0 : i32, i32
  }
  func.func @transform_9(%arg0: i32) -> (i32, i32, i32) {
    %c0_i32 = arith.constant 0 : i32
    %c0_i32_0 = arith.constant 0 : i32
    %c0_i32_1 = arith.constant 0 : i32
    return %arg0, %c0_i32, %c0_i32_0 : i32, i32, i32
  }
}

</mosaic_0001>

<llo_original>
// kernel: tile.23
$region0: #{tile.23}
  #allocation0 [shape = 's32[1]{0}', space=sflag, size = 0x4, scoped, tag = 'scoped memory for tile.23']
  %s0 = inlined_call_operand.vmem [shape: f32[8], index: 0, kind: input, shape index: {}]
  %s1 = inlined_call_operand.vmem [shape: f32[16,8], index: 1, kind: output, shape index: {}]
  // Predicated region
  $region2: #{tile.23} parent=0 // pred_check
    _
  $region3: #{tile.23} parent=0 // pred_check_branch
    %3 = sbr.rel (0) target = $region5
  $region4: #{tile.23} parent=0 // pred_region
    _
  $region5: #{tile.23} parent=0 // pred_fallthru
    _
  %v4 = vld [vmem:[%s0] ss:$0 sm:$0xff]
  %5 = vst [vmem:[%s1] sm:$0xff] %v4
  %s6 = scalar_lea.vmem %s1, 8
  %7 = vst [vmem:[%s6] sm:$0xff] %v4

// kernel: tile.24
$region0: #{tile.24}
  %s0 = inlined_call_operand.vmem [shape: f32[16,8], index: 0, kind: input, shape index: {}]
  %s1 = inlined_call_operand.vmem [shape: f32[1,128], index: 1, kind: output, shape index: {}]
  $region1: #{tile.24} parent=0
    #allocation0 [shape = 'u8[4096]{0}', space=vmem, size = 0x1000, scoped, tag = 'scoped mem for output reshape']
    %v2 = vld [vmem:[%s0] sm:$0x1]
    %vm3 = vcmask 64512
    %4 = vst.msk [vmem:[#allocation0] sm:$0x1] %vm3, %v2
    %s5 = scalar_lea.vmem %s0, 15
    %v6 = vld [vmem:[%s5] sm:$0x1]
    %7 = vrot.lane.b32.xlu0 %v6, 120
    %v8 = vpop.permute.xlu0 %7
    %vm9 = vcmask 1048512
    %10 = vst.msk [vmem:[#allocation0] sm:$0x1] %vm9, %v8
    %s11 = scalar_lea.vmem %s0, 14
    %v12 = vld [vmem:[%s11] sm:$0x1]
    %13 = vrot.lane.b32.xlu0 %v12, 112
    %v14 = vpop.permute.xlu0 %13
    %vm15 = vcmask 982912
    %16 = vst.msk [vmem:[#allocation0] sm:$0x1] %vm15, %v14
    %s17 = scalar_lea.vmem %s0, 13
    %v18 = vld [vmem:[%s17] sm:$0x1]
    %19 = vrot.lane.b32.xlu0 %v18, 104
    %v20 = vpop.permute.xlu0 %19
    %vm21 = vcmask 917312
    %22 = vst.msk [vmem:[#allocation0] sm:$0x1] %vm21, %v20
    %s23 = scalar_lea.vmem %s0, 12
    %v24 = vld [vmem:[%s23] sm:$0x1]
    %25 = vrot.lane.b32.xlu0 %v24, 96
    %v26 = vpop.permute.xlu0 %25
    %vm27 = vcmask 851712
    %28 = vst.msk [vmem:[#allocation0] sm:$0x1] %vm27, %v26
    %s29 = scalar_lea.vmem %s0, 11
    %v30 = vld [vmem:[%s29] sm:$0x1]
    %31 = vrot.lane.b32.xlu0 %v30, 88
    %v32 = vpop.permute.xlu0 %31
    %vm33 = vcmask 786112
    %34 = vst.msk [vmem:[#allocation0] sm:$0x1] %vm33, %v32
    %s35 = scalar_lea.vmem %s0, 10
    %v36 = vld [vmem:[%s35] sm:$0x1]
    %37 = vrot.lane.b32.xlu0 %v36, 80
    %v38 = vpop.permute.xlu0 %37
    %vm39 = vcmask 720512
    %40 = vst.msk [vmem:[#allocation0] sm:$0x1] %vm39, %v38
    %s41 = scalar_lea.vmem %s0, 9
    %v42 = vld [vmem:[%s41] sm:$0x1]
    %43 = vrot.lane.b32.xlu0 %v42, 72
    %v44 = vpop.permute.xlu0 %43
    %vm45 = vcmask 654912
    %46 = vst.msk [vmem:[#allocation0] sm:$0x1] %vm45, %v44
    %s47 = scalar_lea.vmem %s0, 8
    %v48 = vld [vmem:[%s47] sm:$0x1]
    %49 = vrot.lane.b32.xlu0 %v48, 64
    %v50 = vpop.permute.xlu0 %49
    %vm51 = vcmask 589312
    %52 = vst.msk [vmem:[#allocation0] sm:$0x1] %vm51, %v50
    %s53 = scalar_lea.vmem %s0, 7
    %v54 = vld [vmem:[%s53] sm:$0x1]
    %55 = vrot.lane.b32.xlu0 %v54, 56
    %v56 = vpop.permute.xlu0 %55
    %vm57 = vcmask 523712
    %58 = vst.msk [vmem:[#allocation0] sm:$0x1] %vm57, %v56
    %s59 = scalar_lea.vmem %s0, 6
    %v60 = vld [vmem:[%s59] sm:$0x1]
    %61 = vrot.lane.b32.xlu0 %v60, 48
    %v62 = vpop.permute.xlu0 %61
    %vm63 = vcmask 458112
    %64 = vst.msk [vmem:[#allocation0] sm:$0x1] %vm63, %v62
    %s65 = scalar_lea.vmem %s0, 5
    %v66 = vld [vmem:[%s65] sm:$0x1]
    %67 = vrot.lane.b32.xlu0 %v66, 40
    %v68 = vpop.permute.xlu0 %67
    %vm69 = vcmask 392512
    %70 = vst.msk [vmem:[#allocation0] sm:$0x1] %vm69, %v68
    %s71 = scalar_lea.vmem %s0, 4
    %v72 = vld [vmem:[%s71] sm:$0x1]
    %73 = vrot.lane.b32.xlu0 %v72, 32
    %v74 = vpop.permute.xlu0 %73
    %vm75 = vcmask 326912
    %76 = vst.msk [vmem:[#allocation0] sm:$0x1] %vm75, %v74
    %s77 = scalar_lea.vmem %s0, 3
    %v78 = vld [vmem:[%s77] sm:$0x1]
    %79 = vrot.lane.b32.xlu0 %v78, 24
    %v80 = vpop.permute.xlu0 %79
    %vm81 = vcmask 261312
    %82 = vst.msk [vmem:[#allocation0] sm:$0x1] %vm81, %v80
    %s83 = scalar_lea.vmem %s0, 2
    %v84 = vld [vmem:[%s83] sm:$0x1]
    %85 = vrot.lane.b32.xlu0 %v84, 16
    %v86 = vpop.permute.xlu0 %85
    %vm87 = vcmask 195712
    %88 = vst.msk [vmem:[#allocation0] sm:$0x1] %vm87, %v86
    %s89 = scalar_lea.vmem %s0, 1
    %v90 = vld [vmem:[%s89] sm:$0x1]
    %91 = vrot.lane.b32.xlu0 %v90, 8
    %v92 = vpop.permute.xlu0 %91
    %vm93 = vcmask 130112
    %94 = vst.msk [vmem:[#allocation0] sm:$0x1] %vm93, %v92
    %s96 = ssub.s32 2, 1
    %v97 = vld [vmem:[#allocation0] sm:%s96]
    %s99 = ssub.s32 2, 1
    %100 = vst [vmem:[%s1] sm:%s99] %v97

// kernel: block_conv_forward.1
$region0: #{block_conv_forward.1}
  #allocation0 [shape = 'u32[]', space=smem, size = 0x4, offset = 0x4, fixed_abs, tag = 'smem constant byte address 0x4 - core index']
  #allocation1 [shape = 'u32[72,128]{1,0:T(1,128)}', space=vmem, size = 0x9000, scoped, tag = 'internal scratch']
  #allocation2 [shape = 'f32[18,64]{1,0:T(8,128)}', space=vmem, size = 0x3000, scoped, tag = 'scratch operand']
  #allocation3 [shape = 'f32[18,128]{1,0:T(8,128)}', space=vmem, size = 0x3000, scoped, tag = 'scratch operand']
  %s0 = inlined_call_operand.vmem [shape: f32[2,16,64], index: 0, kind: input, shape index: {}]
  %s1 = inlined_call_operand.vmem [shape: bf16[64,128], index: 1, kind: input, shape index: {}]
  %s2 = inlined_call_operand.vmem [shape: f32[1,128], index: 2, kind: input, shape index: {}]
  %s3 = inlined_call_operand.vmem [shape: bf16[3,64,128], index: 3, kind: input, shape index: {}]
  %s4 = inlined_call_operand.vmem [shape: f32[1,128], index: 4, kind: input, shape index: {}]
  %s5 = inlined_call_operand.vmem [shape: bf16[3,128,128], index: 5, kind: input, shape index: {}]
  %s6 = inlined_call_operand.vmem [shape: f32[1,128], index: 6, kind: input, shape index: {}]
  %s7 = inlined_call_operand.vmem [shape: bf16[3,128,128], index: 7, kind: input, shape index: {}]
  %s8 = inlined_call_operand.vmem [shape: f32[1,128], index: 8, kind: input, shape index: {}]
  %s9 = inlined_call_operand.vmem [shape: f32[2,16,128], index: 9, kind: output, shape index: {}]
  %s10 = sld [smem:[#allocation0]]
  $region69: #{block_conv_forward.1} parent=0
    _
  %s12 = ssub.s32 1, %s10
  %s13 = scalar_select 0, %s12, %s10
  loop: start=0, step=1, limit=4
  $region2: #{block_conv_forward.1} parent=0 // loop_pre_header
    _
  $region3: #{block_conv_forward.1} parent=0 // loop_header
    %s15 = sphi 0, %s19
    %p16 = scmp.ge.s32.totalorder %s15, 4
    %s25 = sphi 0, %s27
    %s28 = sphi 0, %s25
    %s29 = sphi 0, %s28
    %s45 = sphi 0, %s29
    %s49 = sphi 0, %s49
    %s51 = sphi 0, %s49
    %s52 = sphi 0, %s51
    %s66 = sphi 0, %s52
    %s70 = sphi 0, %s70
    %s72 = sphi 0, %s70
    %s73 = sphi 0, %s72
    %s87 = sphi 0, %s73
    %s91 = sphi 0, %s91
    %s93 = sphi 0, %s91
    %s94 = sphi 0, %s93
    %s108 = sphi 0, %s94
    %s112 = sphi 0, %s112
    %s114 = sphi 0, %s112
    %s115 = sphi 0, %s114
    %s129 = sphi 0, %s115
    %s133 = sphi 0, %s133
    %s135 = sphi 0, %s133
    %s136 = sphi 0, %s135
    %s150 = sphi 0, %s136
    %s154 = sphi 0, %s154
    %s156 = sphi 0, %s154
    %s157 = sphi 0, %s156
    %s171 = sphi 0, %s157
    %s175 = sphi 0, %s175
    %s177 = sphi 0, %s175
    %s178 = sphi 0, %s177
    %s192 = sphi 0, %s178
    %s196 = sphi 0, %s196
    %s198 = sphi 0, %s196
    %s199 = sphi 0, %s198
    %s213 = sphi 0, %s199
    %s219 = sphi 0, %s221
    %s222 = sphi 0, %s219
    %s223 = sphi 0, %s222
    %s239 = sphi 0, %s223
  $region4: #{block_conv_forward.1} parent=0 // loop_header_branch
    %18 = sbr.rel (%p16) target = $region8
  $region5: #{block_conv_forward.1} parent=0 // loop_body
    %s20 = ssub.s32 %s15, 1
    %s21 = ssub.s32 %s15, 2
    %s22 = sadd.s32 %s15, 1
    %s23 = ssub.s32 %s15, %s22
    %p24 = scmp.eq.s32.totalorder %s23, 0
    %s26 = sadd.s32 %s25, 1
    %s27 = scalar_select %p24, %s25, %s26
    %p30 = pneg %p24
    %p31 = scmp.eq.s32.totalorder %s15, 1
    %p32 = por %p30, %p31
    %p33 = scmp.ne.s32.totalorder %s25, %s28
    %p34 = scmp.eq.s32.totalorder %s15, 0
    %p35 = por %p33, %p34
    %p36 = scmp.ne.s32.totalorder %s25, %s28
    %p37 = scmp.eq.s32.totalorder %s20, 1
    %p38 = por %p36, %p37
    %p39 = scmp.ne.s32.totalorder %s28, %s29
    %p40 = scmp.eq.s32.totalorder %s20, 0
    %p41 = por %p39, %p40
    %p42 = scmp.ne.s32.totalorder %s28, %s29
    %p43 = scmp.eq.s32.totalorder %s21, 1
    %p44 = por %p42, %p43
    %p46 = scmp.ne.s32.totalorder %s29, %s45
    %p47 = scmp.eq.s32.totalorder %s21, 0
    %p48 = por %p46, %p47
    %s50 = sadd.s32 %s49, 1
    %p53 = scmp.eq.s32.totalorder %s15, 1
    %p54 = scmp.ne.s32.totalorder %s49, %s51
    %p55 = scmp.eq.s32.totalorder %s15, 0
    %p56 = por %p54, %p55
    %p57 = scmp.ne.s32.totalorder %s49, %s51
    %p58 = scmp.eq.s32.totalorder %s20, 1
    %p59 = por %p57, %p58
    %p60 = scmp.ne.s32.totalorder %s51, %s52
    %p61 = scmp.eq.s32.totalorder %s20, 0
    %p62 = por %p60, %p61
    %p63 = scmp.ne.s32.totalorder %s51, %s52
    %p64 = scmp.eq.s32.totalorder %s21, 1
    %p65 = por %p63, %p64
    %p67 = scmp.ne.s32.totalorder %s52, %s66
    %p68 = scmp.eq.s32.totalorder %s21, 0
    %p69 = por %p67, %p68
    %s71 = sadd.s32 %s70, 1
    %p74 = scmp.eq.s32.totalorder %s15, 1
    %p75 = scmp.ne.s32.totalorder %s70, %s72
    %p76 = scmp.eq.s32.totalorder %s15, 0
    %p77 = por %p75, %p76
    %p78 = scmp.ne.s32.totalorder %s70, %s72
    %p79 = scmp.eq.s32.totalorder %s20, 1
    %p80 = por %p78, %p79
    %p81 = scmp.ne.s32.totalorder %s72, %s73
    %p82 = scmp.eq.s32.totalorder %s20, 0
    %p83 = por %p81, %p82
    %p84 = scmp.ne.s32.totalorder %s72, %s73
    %p85 = scmp.eq.s32.totalorder %s21, 1
    %p86 = por %p84, %p85
    %p88 = scmp.ne.s32.totalorder %s73, %s87
    %p89 = scmp.eq.s32.totalorder %s21, 0
    %p90 = por %p88, %p89
    %s92 = sadd.s32 %s91, 1
    %p95 = scmp.eq.s32.totalorder %s15, 1
    %p96 = scmp.ne.s32.totalorder %s91, %s93
    %p97 = scmp.eq.s32.totalorder %s15, 0
    %p98 = por %p96, %p97
    %p99 = scmp.ne.s32.totalorder %s91, %s93
    %p100 = scmp.eq.s32.totalorder %s20, 1
    %p101 = por %p99, %p100
    %p102 = scmp.ne.s32.totalorder %s93, %s94
    %p103 = scmp.eq.s32.totalorder %s20, 0
    %p104 = por %p102, %p103
    %p105 = scmp.ne.s32.totalorder %s93, %s94
    %p106 = scmp.eq.s32.totalorder %s21, 1
    %p107 = por %p105, %p106
    %p109 = scmp.ne.s32.totalorder %s94, %s108
    %p110 = scmp.eq.s32.totalorder %s21, 0
    %p111 = por %p109, %p110
    %s113 = sadd.s32 %s112, 1
    %p116 = scmp.eq.s32.totalorder %s15, 1
    %p117 = scmp.ne.s32.totalorder %s112, %s114
    %p118 = scmp.eq.s32.totalorder %s15, 0
    %p119 = por %p117, %p118
    %p120 = scmp.ne.s32.totalorder %s112, %s114
    %p121 = scmp.eq.s32.totalorder %s20, 1
    %p122 = por %p120, %p121
    %p123 = scmp.ne.s32.totalorder %s114, %s115
    %p124 = scmp.eq.s32.totalorder %s20, 0
    %p125 = por %p123, %p124
    %p126 = scmp.ne.s32.totalorder %s114, %s115
    %p127 = scmp.eq.s32.totalorder %s21, 1
    %p128 = por %p126, %p127
    %p130 = scmp.ne.s32.totalorder %s115, %s129
    %p131 = scmp.eq.s32.totalorder %s21, 0
    %p132 = por %p130, %p131
    %s134 = sadd.s32 %s133, 1
    %p137 = scmp.eq.s32.totalorder %s15, 1
    %p138 = scmp.ne.s32.totalorder %s133, %s135
    %p139 = scmp.eq.s32.totalorder %s15, 0
    %p140 = por %p138, %p139
    %p141 = scmp.ne.s32.totalorder %s133, %s135
    %p142 = scmp.eq.s32.totalorder %s20, 1
    %p143 = por %p141, %p142
    %p144 = scmp.ne.s32.totalorder %s135, %s136
    %p145 = scmp.eq.s32.totalorder %s20, 0
    %p146 = por %p144, %p145
    %p147 = scmp.ne.s32.totalorder %s135, %s136
    %p148 = scmp.eq.s32.totalorder %s21, 1
    %p149 = por %p147, %p148
    %p151 = scmp.ne.s32.totalorder %s136, %s150
    %p152 = scmp.eq.s32.totalorder %s21, 0
    %p153 = por %p151, %p152
    %s155 = sadd.s32 %s154, 1
    %p158 = scmp.eq.s32.totalorder %s15, 1
    %p159 = scmp.ne.s32.totalorder %s154, %s156
    %p160 = scmp.eq.s32.totalorder %s15, 0
    %p161 = por %p159, %p160
    %p162 = scmp.ne.s32.totalorder %s154, %s156
    %p163 = scmp.eq.s32.totalorder %s20, 1
    %p164 = por %p162, %p163
    %p165 = scmp.ne.s32.totalorder %s156, %s157
    %p166 = scmp.eq.s32.totalorder %s20, 0
    %p167 = por %p165, %p166
    %p168 = scmp.ne.s32.totalorder %s156, %s157
    %p169 = scmp.eq.s32.totalorder %s21, 1
    %p170 = por %p168, %p169
    %p172 = scmp.ne.s32.totalorder %s157, %s171
    %p173 = scmp.eq.s32.totalorder %s21, 0
    %p174 = por %p172, %p173
    %s176 = sadd.s32 %s175, 1
    %p179 = scmp.eq.s32.totalorder %s15, 1
    %p180 = scmp.ne.s32.totalorder %s175, %s177
    %p181 = scmp.eq.s32.totalorder %s15, 0
    %p182 = por %p180, %p181
    %p183 = scmp.ne.s32.totalorder %s175, %s177
    %p184 = scmp.eq.s32.totalorder %s20, 1
    %p185 = por %p183, %p184
    %p186 = scmp.ne.s32.totalorder %s177, %s178
    %p187 = scmp.eq.s32.totalorder %s20, 0
    %p188 = por %p186, %p187
    %p189 = scmp.ne.s32.totalorder %s177, %s178
    %p190 = scmp.eq.s32.totalorder %s21, 1
    %p191 = por %p189, %p190
    %p193 = scmp.ne.s32.totalorder %s178, %s192
    %p194 = scmp.eq.s32.totalorder %s21, 0
    %p195 = por %p193, %p194
    %s197 = sadd.s32 %s196, 1
    %p200 = scmp.eq.s32.totalorder %s15, 1
    %p201 = scmp.ne.s32.totalorder %s196, %s198
    %p202 = scmp.eq.s32.totalorder %s15, 0
    %p203 = por %p201, %p202
    %p204 = scmp.ne.s32.totalorder %s196, %s198
    %p205 = scmp.eq.s32.totalorder %s20, 1
    %p206 = por %p204, %p205
    %p207 = scmp.ne.s32.totalorder %s198, %s199
    %p208 = scmp.eq.s32.totalorder %s20, 0
    %p209 = por %p207, %p208
    %p210 = scmp.ne.s32.totalorder %s198, %s199
    %p211 = scmp.eq.s32.totalorder %s21, 1
    %p212 = por %p210, %p211
    %p214 = scmp.ne.s32.totalorder %s199, %s213
    %p215 = scmp.eq.s32.totalorder %s21, 0
    %p216 = por %p214, %p215
    %s217 = ssub.s32 %s15, %s22
    %p218 = scmp.eq.s32.totalorder %s217, 0
    %s220 = sadd.s32 %s219, 1
    %s221 = scalar_select %p218, %s219, %s220
    %p224 = pneg %p218
    %p225 = scmp.eq.s32.totalorder %s15, 1
    %p226 = por %p224, %p225
    %p227 = scmp.ne.s32.totalorder %s219, %s222
    %p228 = scmp.eq.s32.totalorder %s15, 0
    %p229 = por %p227, %p228
    %p230 = scmp.ne.s32.totalorder %s219, %s222
    %p231 = scmp.eq.s32.totalorder %s20, 1
    %p232 = por %p230, %p231
    %p233 = scmp.ne.s32.totalorder %s222, %s223
    %p234 = scmp.eq.s32.totalorder %s20, 0
    %p235 = por %p233, %p234
    %p236 = scmp.ne.s32.totalorder %s222, %s223
    %p237 = scmp.eq.s32.totalorder %s21, 1
    %p238 = por %p236, %p237
    %p240 = scmp.ne.s32.totalorder %s223, %s239
    %p241 = scmp.eq.s32.totalorder %s21, 0
    %p242 = por %p240, %p241
    %p243 = scmp.le.s32.totalorder 1, %s15
    %p244 = scmp.lt.s32.totalorder %s15, 3
    %p245 = pnand %p243, %p244
    %p246 = pneg %p245
    // Predicated region
    $region9: #{block_conv_forward.1} parent=5 // pred_check
      _
    $region10: #{block_conv_forward.1} parent=5 // pred_check_branch
      %248 = sbr.rel (%p245) target = $region12
    $region11: #{block_conv_forward.1} parent=5 // pred_region
      %s249 = ssub.s32 %s15, 1
      // Predicated region
      $region13: #{block_conv_forward.1} parent=11 // pred_check
        %p250 = pneg %p62
      $region14: #{block_conv_forward.1} parent=11 // pred_check_branch
        %252 = sbr.rel (%p250) target = $region16
      $region15: #{block_conv_forward.1} parent=11 // pred_region
        _
      $region16: #{block_conv_forward.1} parent=11 // pred_fallthru
        _
      // Predicated region
      $region17: #{block_conv_forward.1} parent=11 // pred_check
        %p253 = pneg %p83
      $region18: #{block_conv_forward.1} parent=11 // pred_check_branch
        %255 = sbr.rel (%p253) target = $region20
      $region19: #{block_conv_forward.1} parent=11 // pred_region
        _
      $region20: #{block_conv_forward.1} parent=11 // pred_fallthru
        _
      // Predicated region
      $region21: #{block_conv_forward.1} parent=11 // pred_check
        %p256 = pneg %p104
      $region22: #{block_conv_forward.1} parent=11 // pred_check_branch
        %258 = sbr.rel (%p256) target = $region24
      $region23: #{block_conv_forward.1} parent=11 // pred_region
        _
      $region24: #{block_conv_forward.1} parent=11 // pred_fallthru
        _
      // Predicated region
      $region25: #{block_conv_forward.1} parent=11 // pred_check
        %p259 = pneg %p125
      $region26: #{block_conv_forward.1} parent=11 // pred_check_branch
        %261 = sbr.rel (%p259) target = $region28
      $region27: #{block_conv_forward.1} parent=11 // pred_region
        _
      $region28: #{block_conv_forward.1} parent=11 // pred_fallthru
        _
      // Predicated region
      $region29: #{block_conv_forward.1} parent=11 // pred_check
        %p262 = pneg %p146
      $region30: #{block_conv_forward.1} parent=11 // pred_check_branch
        %264 = sbr.rel (%p262) target = $region32
      $region31: #{block_conv_forward.1} parent=11 // pred_region
        _
      $region32: #{block_conv_forward.1} parent=11 // pred_fallthru
        _
      // Predicated region
      $region33: #{block_conv_forward.1} parent=11 // pred_check
        %p265 = pneg %p167
      $region34: #{block_conv_forward.1} parent=11 // pred_check_branch
        %267 = sbr.rel (%p265) target = $region36
      $region35: #{block_conv_forward.1} parent=11 // pred_region
        _
      $region36: #{block_conv_forward.1} parent=11 // pred_fallthru
        _
      // Predicated region
      $region37: #{block_conv_forward.1} parent=11 // pred_check
        %p268 = pneg %p188
      $region38: #{block_conv_forward.1} parent=11 // pred_check_branch
        %270 = sbr.rel (%p268) target = $region40
      $region39: #{block_conv_forward.1} parent=11 // pred_region
        _
      $region40: #{block_conv_forward.1} parent=11 // pred_fallthru
        _
      // Predicated region
      $region41: #{block_conv_forward.1} parent=11 // pred_check
        %p271 = pneg %p209
      $region42: #{block_conv_forward.1} parent=11 // pred_check_branch
        %273 = sbr.rel (%p271) target = $region44
      $region43: #{block_conv_forward.1} parent=11 // pred_region
        _
      $region44: #{block_conv_forward.1} parent=11 // pred_fallthru
        _
    $region12: #{block_conv_forward.1} parent=5 // pred_fallthru
      _
    %p274 = scmp.lt.s32.totalorder %s15, 2
    // Predicated region
    $region45: #{block_conv_forward.1} parent=5 // pred_check
      %p275 = pneg %p274
    $region46: #{block_conv_forward.1} parent=5 // pred_check_branch
      %277 = sbr.rel (%p275) target = $region48
    $region47: #{block_conv_forward.1} parent=5 // pred_region
      // Predicated region
      $region49: #{block_conv_forward.1} parent=47 // pred_check
        %p278 = pneg %p35
      $region50: #{block_conv_forward.1} parent=47 // pred_check_branch
        %280 = sbr.rel (%p278) target = $region52
      $region51: #{block_conv_forward.1} parent=47 // pred_region
        %p281 = scmp.lt.s32.totalorder %s15, 1
        %s282 = scalar_select %p281, %s15, 1
        %s283 = smul.addr %s282, 2
        %s284 = smul.addr %s283, 8
        %s285 = scalar_lea.vmem %s0, %s284
      $region52: #{block_conv_forward.1} parent=47 // pred_fallthru
        _
    $region48: #{block_conv_forward.1} parent=5 // pred_fallthru
      _
    %p286 = scmp.le.s32.totalorder 1, %s15
    %p287 = scmp.lt.s32.totalorder %s15, 3
    %p288 = pnand %p286, %p287
    %p289 = pneg %p288
    // Predicated region
    $region53: #{block_conv_forward.1} parent=5 // pred_check
      _
    $region54: #{block_conv_forward.1} parent=5 // pred_check_branch
      %291 = sbr.rel (%p288) target = $region56
    $region55: #{block_conv_forward.1} parent=5 // pred_region
      %s292 = ssub.s32 %s15, 1
      %p293 = scmp.lt.s32.totalorder %s20, 1
      %s294 = scalar_select %p293, %s20, 1
      %s295 = smul.addr %s294, 2
      %s296 = smul.addr %s295, 8
      %s297 = scalar_lea.vmem %s0, %s296
      %p298 = pneg %p41
      %p299 = pneg %p38
      %p300 = pneg %p62
      %p301 = pneg %p59
      %p302 = pneg %p83
      %p303 = pneg %p80
      %p304 = pneg %p104
      %p305 = pneg %p101
      %p306 = pneg %p125
      %p307 = pneg %p122
      %p308 = pneg %p146
      %p309 = pneg %p143
      %p310 = pneg %p167
      %p311 = pneg %p164
      %p312 = pneg %p188
      %p313 = pneg %p185
      %p314 = pneg %p209
      %p315 = pneg %p206
      %p316 = pneg %p235
      %p317 = pneg %p232
      %p318 = scmp.lt.s32.totalorder %s20, 1
      %s319 = scalar_select %p318, %s20, 1
      %s320 = smul.addr %s319, 2
      %s321 = smul.addr %s320, 8
      %s322 = scalar_lea.vmem %s9, %s321
      %p323 = scmp.lt.s32.totalorder %s20, 1
      %s324 = scalar_select %p323, %s20, 1
      %s325 = smul.addr %s324, 2
      %s326 = smul.addr %s325, 8
      %s327 = scalar_lea.vmem %s0, %s326
      %p328 = scmp.lt.s32.totalorder %s20, 1
      %s329 = scalar_select %p328, %s20, 1
      %s330 = smul.addr %s329, 2
      %s331 = smul.addr %s330, 8
      %s332 = scalar_lea.vmem %s9, %s331
      %vm334 = vcmask 523264
      %335 = vst.msk [vmem:[#allocation2] sm:$0xff] %vm334, 0.0
      %336 = vst.msk [vmem:[#allocation2 + $0x8] sm:$0xff] %vm334, 0.0
      %vm337 = vcmask 517120
      %338 = vst.msk [vmem:[#allocation2 + $0x10] sm:$0x3] %vm337, 0.0
      %339 = vst [vmem:[#allocation3] sm:$0xff] 0.0
      %340 = vst [vmem:[#allocation3 + $0x8] sm:$0xff] 0.0
      %341 = vst [vmem:[#allocation3 + $0x10] sm:$0x3] 0.0
      %v342 = vld [vmem:[%s327] sm:$0xff]
      %v343 = vld [vmem:[%s327 + $0x8] sm:$0xff]
      %344 = vst.msk [vmem:[#allocation2 + $0x1] sm:$0xff] %vm334, %v342
      %345 = vst.msk [vmem:[#allocation2 + $0x9] sm:$0xff] %vm334, %v343
      %v346 = vpack.c.bf16 %v343, %v342
      %v347 = vld [vmem:[%s1] sm:$0xf]
      %v348 = vld [vmem:[%s1 + $0x4] sm:$0xf]
      %v349 = vld [vmem:[%s1 + $0x8] sm:$0xf]
      %v350 = vld [vmem:[%s1 + $0xc] sm:$0xf]
      %v351 = vld [vmem:[%s1 + $0x10] sm:$0xf]
      %v352 = vld [vmem:[%s1 + $0x14] sm:$0xf]
      %v353 = vld [vmem:[%s1 + $0x18] sm:$0xf]
      %v354 = vld [vmem:[%s1 + $0x1c] sm:$0xf]
      %v355 = vld [vmem:[%s2] sm:$0x1]
      %v357 = vperm.slane %v355, 0
      %v367 = vunpack.c.l.b16 %v347
      %v368 = vunpack.c.l.b16 %v348
      %v369 = vunpack.c.l.b16 %v349
      %v370 = vunpack.c.l.b16 %v350
      %v371 = vunpack.c.l.b16 %v351
      %v372 = vunpack.c.l.b16 %v352
      %v373 = vunpack.c.l.b16 %v353
      %v374 = vunpack.c.l.b16 %v354
      %v375 = vpack.c.b16 %v368, %v367
      %v376 = vpack.c.b16 %v370, %v369
      %v377 = vpack.c.b16 %v372, %v371
      %v378 = vpack.c.b16 %v374, %v373
      %v384 = vsel %vm334, %v346, 0
      %386 = vmatpush.bf16.msra.mxu0 0
      %387 = vmatpush.bf16.msra.mxu0 0
      %388 = vmatpush.bf16.msra.mxu0 0
      %389 = vmatpush.bf16.msra.mxu0 0
      %390 = vmatpush.bf16.msra.mxu0 %v378
      %391 = vmatpush.bf16.msra.mxu0 %v377
      %392 = vmatpush.bf16.msra.mxu0 %v376
      %393 = vmatpush.bf16.msra.mxu0 %v375
      %394 = vmatmul.bf16.gmra.mxu0 %v384
      %v395 = vpop.f32.mrf.mxu0
      %v396 = vadd.f32 %v357, %v395
      %v397 = vpop.f32.mrf.mxu0
      %v398 = vadd.f32 %v357, %v397
      %399 = vdwg.mxu0
      %v400 = vld [vmem:[#allocation2] sm:$0xff]
      %v401 = vld [vmem:[#allocation2 + $0x8] sm:$0xff]
      %v402 = vpack.c.bf16 %v401, %v400
      %v403 = vld [vmem:[%s3] sm:$0xf]
      %v404 = vld [vmem:[%s3 + $0x4] sm:$0xf]
      %v405 = vld [vmem:[%s3 + $0x8] sm:$0xf]
      %v406 = vld [vmem:[%s3 + $0xc] sm:$0xf]
      %v407 = vld [vmem:[%s3 + $0x10] sm:$0xf]
      %v408 = vld [vmem:[%s3 + $0x14] sm:$0xf]
      %v409 = vld [vmem:[%s3 + $0x18] sm:$0xf]
      %v410 = vld [vmem:[%s3 + $0x1c] sm:$0xf]
      %v411 = vld [vmem:[#allocation2 + $0x1] sm:$0xff]
      %v412 = vld [vmem:[#allocation2 + $0x9] sm:$0xff]
      %v413 = vpack.c.bf16 %v412, %v411
      %s414 = scalar_lea.vmem %s3, 32
      %v415 = vld [vmem:[%s414] sm:$0xf]
      %v416 = vld [vmem:[%s414 + $0x4] sm:$0xf]
      %v417 = vld [vmem:[%s414 + $0x8] sm:$0xf]
      %v418 = vld [vmem:[%s414 + $0xc] sm:$0xf]
      %v419 = vld [vmem:[%s414 + $0x10] sm:$0xf]
      %v420 = vld [vmem:[%s414 + $0x14] sm:$0xf]
      %v421 = vld [vmem:[%s414 + $0x18] sm:$0xf]
      %v422 = vld [vmem:[%s414 + $0x1c] sm:$0xf]
      %v431 = vunpack.c.l.b16 %v415
      %v432 = vunpack.c.l.b16 %v416
      %v433 = vunpack.c.l.b16 %v417
      %v434 = vunpack.c.l.b16 %v418
      %v435 = vunpack.c.l.b16 %v419
      %v436 = vunpack.c.l.b16 %v420
      %v437 = vunpack.c.l.b16 %v421
      %v438 = vunpack.c.l.b16 %v422
      %v439 = vpack.c.b16 %v432, %v431
      %v440 = vpack.c.b16 %v434, %v433
      %v441 = vpack.c.b16 %v436, %v435
      %v442 = vpack.c.b16 %v438, %v437
      %v448 = vsel %vm334, %v413, 0
      %450 = vmatpush.bf16.msra.mxu0 0
      %451 = vmatpush.bf16.msra.mxu0 0
      %452 = vmatpush.bf16.msra.mxu0 0
      %453 = vmatpush.bf16.msra.mxu0 0
      %454 = vmatpush.bf16.msra.mxu0 %v442
      %455 = vmatpush.bf16.msra.mxu0 %v441
      %456 = vmatpush.bf16.msra.mxu0 %v440
      %457 = vmatpush.bf16.msra.mxu0 %v439
      %458 = vmatmul.bf16.gmra.mxu0 %v448
      %v459 = vpop.f32.mrf.mxu0
      %v460 = vadd.f32 0.0, %v459
      %v461 = vpop.f32.mrf.mxu0
      %v462 = vadd.f32 0.0, %v461
      %463 = vdwg.mxu0
      %v472 = vunpack.c.l.b16 %v403
      %v473 = vunpack.c.l.b16 %v404
      %v474 = vunpack.c.l.b16 %v405
      %v475 = vunpack.c.l.b16 %v406
      %v476 = vunpack.c.l.b16 %v407
      %v477 = vunpack.c.l.b16 %v408
      %v478 = vunpack.c.l.b16 %v409
      %v479 = vunpack.c.l.b16 %v410
      %v480 = vpack.c.b16 %v473, %v472
      %v481 = vpack.c.b16 %v475, %v474
      %v482 = vpack.c.b16 %v477, %v476
      %v483 = vpack.c.b16 %v479, %v478
      %v489 = vsel %vm334, %v402, 0
      %491 = vmatpush.bf16.msra.mxu0 0
      %492 = vmatpush.bf16.msra.mxu0 0
      %493 = vmatpush.bf16.msra.mxu0 0
      %494 = vmatpush.bf16.msra.mxu0 0
      %495 = vmatpush.bf16.msra.mxu0 %v483
      %496 = vmatpush.bf16.msra.mxu0 %v482
      %497 = vmatpush.bf16.msra.mxu0 %v481
      %498 = vmatpush.bf16.msra.mxu0 %v480
      %499 = vmatmul.bf16.gmra.mxu0 %v489
      %v500 = vpop.f32.mrf.mxu0
      %v501 = vadd.f32 %v460, %v500
      %v502 = vpop.f32.mrf.mxu0
      %v503 = vadd.f32 %v462, %v502
      %504 = vdwg.mxu0
      %v505 = vld [vmem:[#allocation2 + $0x2] sm:$0xff]
      %v506 = vld [vmem:[#allocation2 + $0xa] sm:$0xff]
      %v507 = vpack.c.bf16 %v506, %v505
      %s508 = scalar_lea.vmem %s3, 64
      %v509 = vld [vmem:[%s508] sm:$0xf]
      %v510 = vld [vmem:[%s508 + $0x4] sm:$0xf]
      %v511 = vld [vmem:[%s508 + $0x8] sm:$0xf]
      %v512 = vld [vmem:[%s508 + $0xc] sm:$0xf]
      %v513 = vld [vmem:[%s508 + $0x10] sm:$0xf]
      %v514 = vld [vmem:[%s508 + $0x14] sm:$0xf]
      %v515 = vld [vmem:[%s508 + $0x18] sm:$0xf]
      %v516 = vld [vmem:[%s508 + $0x1c] sm:$0xf]
      %v525 = vunpack.c.l.b16 %v509
      %v526 = vunpack.c.l.b16 %v510
      %v527 = vunpack.c.l.b16 %v511
      %v528 = vunpack.c.l.b16 %v512
      %v529 = vunpack.c.l.b16 %v513
      %v530 = vunpack.c.l.b16 %v514
      %v531 = vunpack.c.l.b16 %v515
      %v532 = vunpack.c.l.b16 %v516
      %v533 = vpack.c.b16 %v526, %v525
      %v534 = vpack.c.b16 %v528, %v527
      %v535 = vpack.c.b16 %v530, %v529
      %v536 = vpack.c.b16 %v532, %v531
      %v542 = vsel %vm334, %v507, 0
      %544 = vmatpush.bf16.msra.mxu0 0
      %545 = vmatpush.bf16.msra.mxu0 0
      %546 = vmatpush.bf16.msra.mxu0 0
      %547 = vmatpush.bf16.msra.mxu0 0
      %548 = vmatpush.bf16.msra.mxu0 %v536
      %549 = vmatpush.bf16.msra.mxu0 %v535
      %550 = vmatpush.bf16.msra.mxu0 %v534
      %551 = vmatpush.bf16.msra.mxu0 %v533
      %552 = vmatmul.bf16.gmra.mxu0 %v542
      %v553 = vpop.f32.mrf.mxu0
      %v554 = vadd.f32 0.0, %v553
      %v555 = vpop.f32.mrf.mxu0
      %v556 = vadd.f32 0.0, %v555
      %557 = vdwg.mxu0
      %v558 = vadd.f32 %v501, %v554
      %v559 = vadd.f32 %v503, %v556
      %v560 = vld [vmem:[%s4] sm:$0x1]
      %v562 = vperm.slane %v560, 0
      %v564 = vadd.f32 %v558, %v562
      %v565 = vadd.f32 %v559, %v562
      %v566 = vmax.f32 %v564, 0.0
      %v567 = vmax.f32 %v565, 0.0
      %568 = vst [vmem:[#allocation3 + $0x1] sm:$0xff] %v566
      %569 = vst [vmem:[#allocation3 + $0x9] sm:$0xff] %v567
      %v570 = vld [vmem:[#allocation3] sm:$0xff]
      %v571 = vld [vmem:[#allocation3 + $0x8] sm:$0xff]
      %v572 = vpack.c.bf16 %v571, %v570
      %v573 = vld [vmem:[%s5] sm:$0xf]
      %v574 = vld [vmem:[%s5 + $0x4] sm:$0xf]
      %v575 = vld [vmem:[%s5 + $0x8] sm:$0xf]
      %v576 = vld [vmem:[%s5 + $0xc] sm:$0xf]
      %v577 = vld [vmem:[%s5 + $0x10] sm:$0xf]
      %v578 = vld [vmem:[%s5 + $0x14] sm:$0xf]
      %v579 = vld [vmem:[%s5 + $0x18] sm:$0xf]
      %v580 = vld [vmem:[%s5 + $0x1c] sm:$0xf]
      %v581 = vld [vmem:[%s5 + $0x20] sm:$0xf]
      %v582 = vld [vmem:[%s5 + $0x24] sm:$0xf]
      %v583 = vld [vmem:[%s5 + $0x28] sm:$0xf]
      %v584 = vld [vmem:[%s5 + $0x2c] sm:$0xf]
      %v585 = vld [vmem:[%s5 + $0x30] sm:$0xf]
      %v586 = vld [vmem:[%s5 + $0x34] sm:$0xf]
      %v587 = vld [vmem:[%s5 + $0x38] sm:$0xf]
      %v588 = vld [vmem:[%s5 + $0x3c] sm:$0xf]
      %v589 = vld [vmem:[#allocation3 + $0x1] sm:$0xff]
      %v590 = vld [vmem:[#allocation3 + $0x9] sm:$0xff]
      %v591 = vpack.c.bf16 %v590, %v589
      %s592 = scalar_lea.vmem %s5, 64
      %v593 = vld [vmem:[%s592] sm:$0xf]
      %v594 = vld [vmem:[%s592 + $0x4] sm:$0xf]
      %v595 = vld [vmem:[%s592 + $0x8] sm:$0xf]
      %v596 = vld [vmem:[%s592 + $0xc] sm:$0xf]
      %v597 = vld [vmem:[%s592 + $0x10] sm:$0xf]
      %v598 = vld [vmem:[%s592 + $0x14] sm:$0xf]
      %v599 = vld [vmem:[%s592 + $0x18] sm:$0xf]
      %v600 = vld [vmem:[%s592 + $0x1c] sm:$0xf]
      %v601 = vld [vmem:[%s592 + $0x20] sm:$0xf]
      %v602 = vld [vmem:[%s592 + $0x24] sm:$0xf]
      %v603 = vld [vmem:[%s592 + $0x28] sm:$0xf]
      %v604 = vld [vmem:[%s592 + $0x2c] sm:$0xf]
      %v605 = vld [vmem:[%s592 + $0x30] sm:$0xf]
      %v606 = vld [vmem:[%s592 + $0x34] sm:$0xf]
      %v607 = vld [vmem:[%s592 + $0x38] sm:$0xf]
      %v608 = vld [vmem:[%s592 + $0x3c] sm:$0xf]
      %v625 = vunpack.c.l.b16 %v593
      %v626 = vunpack.c.l.b16 %v594
      %v627 = vunpack.c.l.b16 %v595
      %v628 = vunpack.c.l.b16 %v596
      %v629 = vunpack.c.l.b16 %v597
      %v630 = vunpack.c.l.b16 %v598
      %v631 = vunpack.c.l.b16 %v599
      %v632 = vunpack.c.l.b16 %v600
      %v633 = vunpack.c.l.b16 %v601
      %v634 = vunpack.c.l.b16 %v602
      %v635 = vunpack.c.l.b16 %v603
      %v636 = vunpack.c.l.b16 %v604
      %v637 = vunpack.c.l.b16 %v605
      %v638 = vunpack.c.l.b16 %v606
      %v639 = vunpack.c.l.b16 %v607
      %v640 = vunpack.c.l.b16 %v608
      %v641 = vpack.c.b16 %v626, %v625
      %v642 = vpack.c.b16 %v628, %v627
      %v643 = vpack.c.b16 %v630, %v629
      %v644 = vpack.c.b16 %v632, %v631
      %v645 = vpack.c.b16 %v634, %v633
      %v646 = vpack.c.b16 %v636, %v635
      %v647 = vpack.c.b16 %v638, %v637
      %v648 = vpack.c.b16 %v640, %v639
      %657 = vmatpush.bf16.msra.mxu0 %v648
      %658 = vmatpush.bf16.msra.mxu0 %v647
      %659 = vmatpush.bf16.msra.mxu0 %v646
      %660 = vmatpush.bf16.msra.mxu0 %v645
      %661 = vmatpush.bf16.msra.mxu0 %v644
      %662 = vmatpush.bf16.msra.mxu0 %v643
      %663 = vmatpush.bf16.msra.mxu0 %v642
      %664 = vmatpush.bf16.msra.mxu0 %v641
      %665 = vmatmul.bf16.gmra.mxu0 %v591
      %v666 = vpop.f32.mrf.mxu0
      %v667 = vadd.f32 0.0, %v666
      %v668 = vpop.f32.mrf.mxu0
      %v669 = vadd.f32 0.0, %v668
      %670 = vdwg.mxu0
      %v687 = vunpack.c.l.b16 %v573
      %v688 = vunpack.c.l.b16 %v574
      %v689 = vunpack.c.l.b16 %v575
      %v690 = vunpack.c.l.b16 %v576
      %v691 = vunpack.c.l.b16 %v577
      %v692 = vunpack.c.l.b16 %v578
      %v693 = vunpack.c.l.b16 %v579
      %v694 = vunpack.c.l.b16 %v580
      %v695 = vunpack.c.l.b16 %v581
      %v696 = vunpack.c.l.b16 %v582
      %v697 = vunpack.c.l.b16 %v583
      %v698 = vunpack.c.l.b16 %v584
      %v699 = vunpack.c.l.b16 %v585
      %v700 = vunpack.c.l.b16 %v586
      %v701 = vunpack.c.l.b16 %v587
      %v702 = vunpack.c.l.b16 %v588
      %v703 = vpack.c.b16 %v688, %v687
      %v704 = vpack.c.b16 %v690, %v689
      %v705 = vpack.c.b16 %v692, %v691
      %v706 = vpack.c.b16 %v694, %v693
      %v707 = vpack.c.b16 %v696, %v695
      %v708 = vpack.c.b16 %v698, %v697
      %v709 = vpack.c.b16 %v700, %v699
      %v710 = vpack.c.b16 %v702, %v701
      %719 = vmatpush.bf16.msra.mxu0 %v710
      %720 = vmatpush.bf16.msra.mxu0 %v709
      %721 = vmatpush.bf16.msra.mxu0 %v708
      %722 = vmatpush.bf16.msra.mxu0 %v707
      %723 = vmatpush.bf16.msra.mxu0 %v706
      %724 = vmatpush.bf16.msra.mxu0 %v705
      %725 = vmatpush.bf16.msra.mxu0 %v704
      %726 = vmatpush.bf16.msra.mxu0 %v703
      %727 = vmatmul.bf16.gmra.mxu0 %v572
      %v728 = vpop.f32.mrf.mxu0
      %v729 = vadd.f32 %v667, %v728
      %v730 = vpop.f32.mrf.mxu0
      %v731 = vadd.f32 %v669, %v730
      %732 = vdwg.mxu0
      %v733 = vld [vmem:[#allocation3 + $0x2] sm:$0xff]
      %v734 = vld [vmem:[#allocation3 + $0xa] sm:$0xff]
      %v735 = vpack.c.bf16 %v734, %v733
      %s736 = scalar_lea.vmem %s5, 128
      %v737 = vld [vmem:[%s736] sm:$0xf]
      %v738 = vld [vmem:[%s736 + $0x4] sm:$0xf]
      %v739 = vld [vmem:[%s736 + $0x8] sm:$0xf]
      %v740 = vld [vmem:[%s736 + $0xc] sm:$0xf]
      %v741 = vld [vmem:[%s736 + $0x10] sm:$0xf]
      %v742 = vld [vmem:[%s736 + $0x14] sm:$0xf]
      %v743 = vld [vmem:[%s736 + $0x18] sm:$0xf]
      %v744 = vld [vmem:[%s736 + $0x1c] sm:$0xf]
      %v745 = vld [vmem:[%s736 + $0x20] sm:$0xf]
      %v746 = vld [vmem:[%s736 + $0x24] sm:$0xf]
      %v747 = vld [vmem:[%s736 + $0x28] sm:$0xf]
      %v748 = vld [vmem:[%s736 + $0x2c] sm:$0xf]
      %v749 = vld [vmem:[%s736 + $0x30] sm:$0xf]
      %v750 = vld [vmem:[%s736 + $0x34] sm:$0xf]
      %v751 = vld [vmem:[%s736 + $0x38] sm:$0xf]
      %v752 = vld [vmem:[%s736 + $0x3c] sm:$0xf]
      %v769 = vunpack.c.l.b16 %v737
      %v770 = vunpack.c.l.b16 %v738
      %v771 = vunpack.c.l.b16 %v739
      %v772 = vunpack.c.l.b16 %v740
      %v773 = vunpack.c.l.b16 %v741
      %v774 = vunpack.c.l.b16 %v742
      %v775 = vunpack.c.l.b16 %v743
      %v776 = vunpack.c.l.b16 %v744
      %v777 = vunpack.c.l.b16 %v745
      %v778 = vunpack.c.l.b16 %v746
      %v779 = vunpack.c.l.b16 %v747
      %v780 = vunpack.c.l.b16 %v748
      %v781 = vunpack.c.l.b16 %v749
      %v782 = vunpack.c.l.b16 %v750
      %v783 = vunpack.c.l.b16 %v751
      %v784 = vunpack.c.l.b16 %v752
      %v785 = vpack.c.b16 %v770, %v769
      %v786 = vpack.c.b16 %v772, %v771
      %v787 = vpack.c.b16 %v774, %v773
      %v788 = vpack.c.b16 %v776, %v775
      %v789 = vpack.c.b16 %v778, %v777
      %v790 = vpack.c.b16 %v780, %v779
      %v791 = vpack.c.b16 %v782, %v781
      %v792 = vpack.c.b16 %v784, %v783
      %801 = vmatpush.bf16.msra.mxu0 %v792
      %802 = vmatpush.bf16.msra.mxu0 %v791
      %803 = vmatpush.bf16.msra.mxu0 %v790
      %804 = vmatpush.bf16.msra.mxu0 %v789
      %805 = vmatpush.bf16.msra.mxu0 %v788
      %806 = vmatpush.bf16.msra.mxu0 %v787
      %807 = vmatpush.bf16.msra.mxu0 %v786
      %808 = vmatpush.bf16.msra.mxu0 %v785
      %809 = vmatmul.bf16.gmra.mxu0 %v735
      %v810 = vpop.f32.mrf.mxu0
      %v811 = vadd.f32 0.0, %v810
      %v812 = vpop.f32.mrf.mxu0
      %v813 = vadd.f32 0.0, %v812
      %814 = vdwg.mxu0
      %v815 = vadd.f32 %v729, %v811
      %v816 = vadd.f32 %v731, %v813
      %v817 = vld [vmem:[%s6] sm:$0x1]
      %v819 = vperm.slane %v817, 0
      %v821 = vadd.f32 %v815, %v819
      %v822 = vadd.f32 %v816, %v819
      %v823 = vmax.f32 %v821, 0.0
      %v824 = vmax.f32 %v822, 0.0
      %825 = vst [vmem:[#allocation3 + $0x1] sm:$0xff] %v823
      %826 = vst [vmem:[#allocation3 + $0x9] sm:$0xff] %v824
      %v827 = vld [vmem:[#allocation3] sm:$0xff]
      %v828 = vld [vmem:[#allocation3 + $0x8] sm:$0xff]
      %v829 = vpack.c.bf16 %v828, %v827
      %v830 = vld [vmem:[%s7] sm:$0xf]
      %v831 = vld [vmem:[%s7 + $0x4] sm:$0xf]
      %v832 = vld [vmem:[%s7 + $0x8] sm:$0xf]
      %v833 = vld [vmem:[%s7 + $0xc] sm:$0xf]
      %v834 = vld [vmem:[%s7 + $0x10] sm:$0xf]
      %v835 = vld [vmem:[%s7 + $0x14] sm:$0xf]
      %v836 = vld [vmem:[%s7 + $0x18] sm:$0xf]
      %v837 = vld [vmem:[%s7 + $0x1c] sm:$0xf]
      %v838 = vld [vmem:[%s7 + $0x20] sm:$0xf]
      %v839 = vld [vmem:[%s7 + $0x24] sm:$0xf]
      %v840 = vld [vmem:[%s7 + $0x28] sm:$0xf]
      %v841 = vld [vmem:[%s7 + $0x2c] sm:$0xf]
      %v842 = vld [vmem:[%s7 + $0x30] sm:$0xf]
      %v843 = vld [vmem:[%s7 + $0x34] sm:$0xf]
      %v844 = vld [vmem:[%s7 + $0x38] sm:$0xf]
      %v845 = vld [vmem:[%s7 + $0x3c] sm:$0xf]
      %v846 = vld [vmem:[#allocation3 + $0x1] sm:$0xff]
      %v847 = vld [vmem:[#allocation3 + $0x9] sm:$0xff]
      %v848 = vpack.c.bf16 %v847, %v846
      %s849 = scalar_lea.vmem %s7, 64
      %v850 = vld [vmem:[%s849] sm:$0xf]
      %v851 = vld [vmem:[%s849 + $0x4] sm:$0xf]
      %v852 = vld [vmem:[%s849 + $0x8] sm:$0xf]
      %v853 = vld [vmem:[%s849 + $0xc] sm:$0xf]
      %v854 = vld [vmem:[%s849 + $0x10] sm:$0xf]
      %v855 = vld [vmem:[%s849 + $0x14] sm:$0xf]
      %v856 = vld [vmem:[%s849 + $0x18] sm:$0xf]
      %v857 = vld [vmem:[%s849 + $0x1c] sm:$0xf]
      %v858 = vld [vmem:[%s849 + $0x20] sm:$0xf]
      %v859 = vld [vmem:[%s849 + $0x24] sm:$0xf]
      %v860 = vld [vmem:[%s849 + $0x28] sm:$0xf]
      %v861 = vld [vmem:[%s849 + $0x2c] sm:$0xf]
      %v862 = vld [vmem:[%s849 + $0x30] sm:$0xf]
      %v863 = vld [vmem:[%s849 + $0x34] sm:$0xf]
      %v864 = vld [vmem:[%s849 + $0x38] sm:$0xf]
      %v865 = vld [vmem:[%s849 + $0x3c] sm:$0xf]
      %v882 = vunpack.c.l.b16 %v850
      %v883 = vunpack.c.l.b16 %v851
      %v884 = vunpack.c.l.b16 %v852
      %v885 = vunpack.c.l.b16 %v853
      %v886 = vunpack.c.l.b16 %v854
      %v887 = vunpack.c.l.b16 %v855
      %v888 = vunpack.c.l.b16 %v856
      %v889 = vunpack.c.l.b16 %v857
      %v890 = vunpack.c.l.b16 %v858
      %v891 = vunpack.c.l.b16 %v859
      %v892 = vunpack.c.l.b16 %v860
      %v893 = vunpack.c.l.b16 %v861
      %v894 = vunpack.c.l.b16 %v862
      %v895 = vunpack.c.l.b16 %v863
      %v896 = vunpack.c.l.b16 %v864
      %v897 = vunpack.c.l.b16 %v865
      %v898 = vpack.c.b16 %v883, %v882
      %v899 = vpack.c.b16 %v885, %v884
      %v900 = vpack.c.b16 %v887, %v886
      %v901 = vpack.c.b16 %v889, %v888
      %v902 = vpack.c.b16 %v891, %v890
      %v903 = vpack.c.b16 %v893, %v892
      %v904 = vpack.c.b16 %v895, %v894
      %v905 = vpack.c.b16 %v897, %v896
      %914 = vmatpush.bf16.msra.mxu0 %v905
      %915 = vmatpush.bf16.msra.mxu0 %v904
      %916 = vmatpush.bf16.msra.mxu0 %v903
      %917 = vmatpush.bf16.msra.mxu0 %v902
      %918 = vmatpush.bf16.msra.mxu0 %v901
      %919 = vmatpush.bf16.msra.mxu0 %v900
      %920 = vmatpush.bf16.msra.mxu0 %v899
      %921 = vmatpush.bf16.msra.mxu0 %v898
      %922 = vmatmul.bf16.gmra.mxu0 %v848
      %v923 = vpop.f32.mrf.mxu0
      %v924 = vadd.f32 0.0, %v923
      %v925 = vpop.f32.mrf.mxu0
      %v926 = vadd.f32 0.0, %v925
      %927 = vdwg.mxu0
      %v944 = vunpack.c.l.b16 %v830
      %v945 = vunpack.c.l.b16 %v831
      %v946 = vunpack.c.l.b16 %v832
      %v947 = vunpack.c.l.b16 %v833
      %v948 = vunpack.c.l.b16 %v834
      %v949 = vunpack.c.l.b16 %v835
      %v950 = vunpack.c.l.b16 %v836
      %v951 = vunpack.c.l.b16 %v837
      %v952 = vunpack.c.l.b16 %v838
      %v953 = vunpack.c.l.b16 %v839
      %v954 = vunpack.c.l.b16 %v840
      %v955 = vunpack.c.l.b16 %v841
      %v956 = vunpack.c.l.b16 %v842
      %v957 = vunpack.c.l.b16 %v843
      %v958 = vunpack.c.l.b16 %v844
      %v959 = vunpack.c.l.b16 %v845
      %v960 = vpack.c.b16 %v945, %v944
      %v961 = vpack.c.b16 %v947, %v946
      %v962 = vpack.c.b16 %v949, %v948
      %v963 = vpack.c.b16 %v951, %v950
      %v964 = vpack.c.b16 %v953, %v952
      %v965 = vpack.c.b16 %v955, %v954
      %v966 = vpack.c.b16 %v957, %v956
      %v967 = vpack.c.b16 %v959, %v958
      %976 = vmatpush.bf16.msra.mxu0 %v967
      %977 = vmatpush.bf16.msra.mxu0 %v966
      %978 = vmatpush.bf16.msra.mxu0 %v965
      %979 = vmatpush.bf16.msra.mxu0 %v964
      %980 = vmatpush.bf16.msra.mxu0 %v963
      %981 = vmatpush.bf16.msra.mxu0 %v962
      %982 = vmatpush.bf16.msra.mxu0 %v961
      %983 = vmatpush.bf16.msra.mxu0 %v960
      %984 = vmatmul.bf16.gmra.mxu0 %v829
      %v985 = vpop.f32.mrf.mxu0
      %v986 = vadd.f32 %v924, %v985
      %v987 = vpop.f32.mrf.mxu0
      %v988 = vadd.f32 %v926, %v987
      %989 = vdwg.mxu0
      %v990 = vld [vmem:[#allocation3 + $0x2] sm:$0xff]
      %v991 = vld [vmem:[#allocation3 + $0xa] sm:$0xff]
      %v992 = vpack.c.bf16 %v991, %v990
      %s993 = scalar_lea.vmem %s7, 128
      %v994 = vld [vmem:[%s993] sm:$0xf]
      %v995 = vld [vmem:[%s993 + $0x4] sm:$0xf]
      %v996 = vld [vmem:[%s993 + $0x8] sm:$0xf]
      %v997 = vld [vmem:[%s993 + $0xc] sm:$0xf]
      %v998 = vld [vmem:[%s993 + $0x10] sm:$0xf]
      %v999 = vld [vmem:[%s993 + $0x14] sm:$0xf]
      %v1000 = vld [vmem:[%s993 + $0x18] sm:$0xf]
      %v1001 = vld [vmem:[%s993 + $0x1c] sm:$0xf]
      %v1002 = vld [vmem:[%s993 + $0x20] sm:$0xf]
      %v1003 = vld [vmem:[%s993 + $0x24] sm:$0xf]
      %v1004 = vld [vmem:[%s993 + $0x28] sm:$0xf]
      %v1005 = vld [vmem:[%s993 + $0x2c] sm:$0xf]
      %v1006 = vld [vmem:[%s993 + $0x30] sm:$0xf]
      %v1007 = vld [vmem:[%s993 + $0x34] sm:$0xf]
      %v1008 = vld [vmem:[%s993 + $0x38] sm:$0xf]
      %v1009 = vld [vmem:[%s993 + $0x3c] sm:$0xf]
      %v1026 = vunpack.c.l.b16 %v994
      %v1027 = vunpack.c.l.b16 %v995
      %v1028 = vunpack.c.l.b16 %v996
      %v1029 = vunpack.c.l.b16 %v997
      %v1030 = vunpack.c.l.b16 %v998
      %v1031 = vunpack.c.l.b16 %v999
      %v1032 = vunpack.c.l.b16 %v1000
      %v1033 = vunpack.c.l.b16 %v1001
      %v1034 = vunpack.c.l.b16 %v1002
      %v1035 = vunpack.c.l.b16 %v1003
      %v1036 = vunpack.c.l.b16 %v1004
      %v1037 = vunpack.c.l.b16 %v1005
      %v1038 = vunpack.c.l.b16 %v1006
      %v1039 = vunpack.c.l.b16 %v1007
      %v1040 = vunpack.c.l.b16 %v1008
      %v1041 = vunpack.c.l.b16 %v1009
      %v1042 = vpack.c.b16 %v1027, %v1026
      %v1043 = vpack.c.b16 %v1029, %v1028
      %v1044 = vpack.c.b16 %v1031, %v1030
      %v1045 = vpack.c.b16 %v1033, %v1032
      %v1046 = vpack.c.b16 %v1035, %v1034
      %v1047 = vpack.c.b16 %v1037, %v1036
      %v1048 = vpack.c.b16 %v1039, %v1038
      %v1049 = vpack.c.b16 %v1041, %v1040
      %1058 = vmatpush.bf16.msra.mxu0 %v1049
      %1059 = vmatpush.bf16.msra.mxu0 %v1048
      %1060 = vmatpush.bf16.msra.mxu0 %v1047
      %1061 = vmatpush.bf16.msra.mxu0 %v1046
      %1062 = vmatpush.bf16.msra.mxu0 %v1045
      %1063 = vmatpush.bf16.msra.mxu0 %v1044
      %1064 = vmatpush.bf16.msra.mxu0 %v1043
      %1065 = vmatpush.bf16.msra.mxu0 %v1042
      %1066 = vmatmul.bf16.gmra.mxu0 %v992
      %v1067 = vpop.f32.mrf.mxu0
      %v1068 = vadd.f32 0.0, %v1067
      %v1069 = vpop.f32.mrf.mxu0
      %v1070 = vadd.f32 0.0, %v1069
      %1071 = vdwg.mxu0
      %v1072 = vadd.f32 %v986, %v1068
      %v1073 = vadd.f32 %v988, %v1070
      %v1074 = vld [vmem:[%s8] sm:$0x1]
      %v1076 = vperm.slane %v1074, 0
      %v1078 = vadd.f32 %v1072, %v1076
      %v1079 = vadd.f32 %v1073, %v1076
      %v1080 = vmax.f32 %v1078, 0.0
      %v1081 = vmax.f32 %v1079, 0.0
      %v1082 = vadd.f32 %v1080, %v396
      %v1083 = vadd.f32 %v1081, %v398
      %1084 = vst [vmem:[%s332] sm:$0xff] %v1082
      %1085 = vst [vmem:[%s332 + $0x8] sm:$0xff] %v1083
      %p1086 = scmp.lt.s32.totalorder %s20, 1
      %s1087 = scalar_select %p1086, %s20, 1
      %s1088 = smul.addr %s1087, 2
      %s1089 = smul.addr %s1088, 8
      %s1090 = scalar_lea.vmem %s9, %s1089
      // Predicated region
      $region57: #{block_conv_forward.1} parent=55 // pred_check
        %p1091 = pneg %p232
      $region58: #{block_conv_forward.1} parent=55 // pred_check_branch
        %1093 = sbr.rel (%p1091) target = $region60
      $region59: #{block_conv_forward.1} parent=55 // pred_region
        _
      $region60: #{block_conv_forward.1} parent=55 // pred_fallthru
        _
    $region56: #{block_conv_forward.1} parent=5 // pred_fallthru
      _
    %p1094 = scmp.le.s32.totalorder 2, %s15
    // Predicated region
    $region61: #{block_conv_forward.1} parent=5 // pred_check
      %p1095 = pneg %p1094
    $region62: #{block_conv_forward.1} parent=5 // pred_check_branch
      %1097 = sbr.rel (%p1095) target = $region64
    $region63: #{block_conv_forward.1} parent=5 // pred_region
      %s1098 = ssub.s32 %s15, 2
      // Predicated region
      $region65: #{block_conv_forward.1} parent=63 // pred_check
        %p1099 = pneg %p238
      $region66: #{block_conv_forward.1} parent=63 // pred_check_branch
        %1101 = sbr.rel (%p1099) target = $region68
      $region67: #{block_conv_forward.1} parent=63 // pred_region
        %p1102 = scmp.lt.s32.totalorder %s21, 1
        %s1103 = scalar_select %p1102, %s21, 1
        %s1104 = smul.addr %s1103, 2
        %s1105 = smul.addr %s1104, 8
        %s1106 = scalar_lea.vmem %s9, %s1105
      $region68: #{block_conv_forward.1} parent=63 // pred_fallthru
        _
    $region64: #{block_conv_forward.1} parent=5 // pred_fallthru
      _
  $region6: #{block_conv_forward.1} parent=0 // loop_footer
    %s19 = sadd.s32 1, %s15
  $region7: #{block_conv_forward.1} parent=0 // loop_footer_branch
    %14 = sbr.rel target = $region3
  $region8: #{block_conv_forward.1} parent=0 // loop_exit
    _

</llo_original>
